<compile_context>
chip_gen: v5e
topology: v5e:2x2
jax: 0.10.0
libtpu: 0.0.40
codegen_flags: <defaults>
</compile_context>

<pallas_src>
import jax
import jax.numpy as jnp
from jax.experimental import pallas as pl
from jax.experimental.pallas import tpu as pltpu

LANES = 128                 # vreg lane width (last dim maps onto lanes)
PAD_ROWS = 32               # pad granularity in rows: safe min tile for f32/bf16/int8
CHUNK_ROWS = 64             # rows accumulated per inner-loop step
MAX_BLOCK_BYTES = 1 << 20   # ~1 MiB per input per grid step (2048 rows f32 / 4096 bf16)
MIN_GRID_BLOCKS = 8         # keep enough grid steps for both TCs + pipelining
SMALL_INPUT_BYTES = 512 * 1024  # below this, plain XLA beats a kernel launch
VMEM_LIMIT_BYTES = 32 * 1024 * 1024


def _to_slab(a):
    """Flatten to 1D, zero-pad only to a multiple of PAD_ROWS*LANES (<= a few KiB),
    reshape to a lane-dense (rows, 128) slab.  No pad / no copy when aligned."""
    flat = a.reshape(-1)
    n = flat.shape[0]
    chunk = PAD_ROWS * LANES
    padded = -(-n // chunk) * chunk
    if padded != n:
        flat = jnp.pad(flat, (0, padded - n))
    return flat.reshape(padded // LANES, LANES)


def _choose_block_rows(rows, itemsize):
    """~1 MiB per input per step (dtype-aware), shrunk so the grid has >= 8 steps
    whenever the data allows it (keeps both TensorCores busy on v7x)."""
    br = max(PAD_ROWS, MAX_BLOCK_BYTES // (LANES * int(itemsize)))
    while br > PAD_ROWS and pl.cdiv(rows, br) < MIN_GRID_BLOCKS:
        br //= 2
    return br


def _build_kernel(block_rows, rows_total):
    """Kernel: per grid step, reduce a (block_rows, 128) block of (x-t)^2 into one
    lane-dense (8, 128) partial-sum block, via a chunked vreg accumulator."""
    chunk = min(CHUNK_ROWS, block_rows)
    num_chunks = block_rows // chunk
    num_full_blocks = rows_total // block_rows
    tail_rows = rows_total - num_full_blocks * block_rows
    ragged = tail_rows != 0  # static: last grid block extends past the slab

    def kernel(x_ref, t_ref, o_ref):
        if ragged:
            is_last = pl.program_id(0) == pl.num_programs(0) - 1
            valid = jnp.where(is_last, tail_rows, block_rows)

        def body(i, acc):
            r0 = pl.multiple_of(i * chunk, chunk)
            xd = x_ref[pl.ds(r0, chunk), :].astype(jnp.float32)
            td = t_ref[pl.ds(r0, chunk), :].astype(jnp.float32)
            d = xd - td
            if ragged:
                row = r0 + jax.lax.broadcasted_iota(jnp.int32, (chunk, LANES), 0)
                d = jnp.where(row < valid, d, 0.0)
            part = d * d
            # Sublane binary-tree reduce down to (8,128); every slice boundary is
            # a multiple of 8 rows -> vreg-aligned VPU adds only.
            while part.shape[0] > 8:
                half = part.shape[0] // 2
                part = part[:half] + part[half:]
            return acc + part

        acc0 = jnp.zeros((8, LANES), jnp.float32)
        acc = jax.lax.fori_loop(0, num_chunks, body, acc0,
                                unroll=min(num_chunks, 8))
        o_ref[...] = acc

    return kernel


def _partial_sums_pallas(x2d, t2d, block_rows):
    rows = x2d.shape[0]
    num_blocks = pl.cdiv(rows, block_rows)
    kernel = _build_kernel(block_rows, rows)
    return pl.pallas_call(
        kernel,
        out_shape=jax.ShapeDtypeStruct((num_blocks * 8, LANES), jnp.float32),
        grid_spec=pltpu.PrefetchScalarGridSpec(
            num_scalar_prefetch=0,
            grid=(num_blocks,),
            in_specs=[
                pl.BlockSpec((block_rows, LANES), lambda i: (i, 0)),
                pl.BlockSpec((block_rows, LANES), lambda i: (i, 0)),
            ],
            out_specs=pl.BlockSpec((8, LANES), lambda i: (i, 0)),
        ),
        compiler_params=pltpu.CompilerParams(
            # No cross-step accumulator -> fully parallel grid axis.
            dimension_semantics=("parallel",),
            vmem_limit_bytes=VMEM_LIMIT_BYTES,
        ),
    )(x2d, t2d)


def _mse_vs_slab_value(x, target2d):
    """MSE between x (any shape) and a pre-flattened/padded target slab."""
    n = x.size
    x2d = _to_slab(x)
    assert x2d.shape == target2d.shape, (x2d.shape, target2d.shape)
    block_rows = _choose_block_rows(x2d.shape[0], x.dtype.itemsize)
    partials = _partial_sums_pallas(x2d, target2d, block_rows)
    return jnp.sum(partials, dtype=jnp.float32) * (1.0 / float(n))


@jax.custom_vjp
def _mse_vs_slab(x, target2d):
    return _mse_vs_slab_value(x, target2d)


def _mse_vs_slab_fwd(x, target2d):
    return _mse_vs_slab_value(x, target2d), (x, target2d)


def _mse_vs_slab_bwd(res, g):
    x, target2d = res
    n = x.size
    t_flat = target2d.reshape(-1)[:n].astype(jnp.float32)
    diff = x.reshape(-1).astype(jnp.float32) - t_flat
    scale = jnp.float32(2.0 / n) * g.astype(jnp.float32)
    gx = (scale * diff).reshape(x.shape).astype(x.dtype)
    # target is always detach()'d in ContentLoss -> its cotangent is dead work.
    # Return a constant zero (DCE'd by XLA) instead of computing/padding it.
    gt2d = jnp.zeros(target2d.shape, target2d.dtype)
    return gx, gt2d


_mse_vs_slab.defvjp(_mse_vs_slab_fwd, _mse_vs_slab_bwd)


def _mse_small(x, target):
    d = x.astype(jnp.float32) - target.astype(jnp.float32)
    return jnp.mean(d * d)


def _is_small(a):
    return a.size * a.dtype.itemsize < SMALL_INPUT_BYTES


def mse_loss_pallas(x, target):
    """Scalar MSE between x and target (matching shapes); target treated as constant."""
    assert x.shape == target.shape, "input/target shape mismatch"
    target = jax.lax.stop_gradient(target)
    if _is_small(x):
        return _mse_small(x, target)
    return _mse_vs_slab(x, _to_slab(target))


class ContentLoss:
    """JAX/Pallas port of the PyTorch ContentLoss module."""

    def __init__(self, target):
        # .detach() -> stop_gradient; target is treated as a constant.
        self.target = jax.lax.stop_gradient(target)
        self._small = _is_small(self.target)
        # Precompute the flattened (lightly padded) lane-dense target slab once.
        self._target2d = None if self._small else _to_slab(self.target)
        # TODO(synk): self.loss is a Python-attribute side effect like the PyTorch
        # module; under jit/scan it is a traced value, not an eager tensor.
        self.loss = None

    def __call__(self, x):
        assert x.shape == self.target.shape, "input/target shape mismatch"
        if self._small:
            self.loss = _mse_small(x, self.target)
        else:
            self.loss = _mse_vs_slab(x, self._target2d)
        return x  # pass-through, identical to the PyTorch forward


if __name__ == "__main__":
    key = jax.random.PRNGKey(0)
    k1, k2, k3, k4, k5, k6, k7, k8 = jax.random.split(key, 8)

    # --- 1) Small feature map (module-spec shape) -> XLA fallback path ------
    x_s = jax.random.normal(k1, (2, 4, 16, 16), dtype=jnp.float32)
    t_s = jax.random.normal(k2, (2, 4, 16, 16), dtype=jnp.float32)
    m_s = ContentLoss(t_s)
    out_s = jax.block_until_ready(m_s(x_s))
    loss_s = jax.block_until_ready(m_s.loss)
    ref_s = jnp.mean((x_s - t_s) ** 2)
    assert jnp.allclose(loss_s, ref_s, rtol=1e-5, atol=1e-6), (loss_s, ref_s)
    assert out_s.shape == x_s.shape and bool(jnp.array_equal(out_s, x_s))

    # --- 2) Aligned mid-size map -> Pallas path, no pad, no tail mask -------
    x_a = jax.random.normal(k3, (2, 64, 64, 64), dtype=jnp.float32)   # 2 MiB
    t_a = jax.random.normal(k4, (2, 64, 64, 64), dtype=jnp.float32)
    m_a = ContentLoss(t_a)
    out_a = jax.block_until_ready(m_a(x_a))
    loss_a = jax.block_until_ready(m_a.loss)
    ref_a = jnp.mean((x_a - t_a) ** 2)
    assert jnp.allclose(loss_a, ref_a, rtol=1e-4, atol=1e-6), (loss_a, ref_a)
    assert bool(jnp.array_equal(out_a, x_a))

    # --- 3) Non-aligned map -> Pallas path, small pad + masked ragged tail --
    x_r = jax.random.normal(k5, (2, 3, 224, 224), dtype=jnp.float32)  # 301056 elems
    t_r = jax.random.normal(k6, (2, 3, 224, 224), dtype=jnp.float32)
    m_r = ContentLoss(t_r)
    _ = m_r(x_r)
    loss_r = jax.block_until_ready(m_r.loss)
    ref_r = jnp.mean((x_r - t_r) ** 2)
    assert jnp.allclose(loss_r, ref_r, rtol=1e-4, atol=1e-6), (loss_r, ref_r)

    # Convenience wrapper path gives the same value.
    loss_w = jax.block_until_ready(mse_loss_pallas(x_r, t_r))
    assert jnp.allclose(loss_w, ref_r, rtol=1e-4, atol=1e-6), (loss_w, ref_r)

    # --- 4) bf16 activations -> dtype-aware block sizing --------------------
    x_b = jax.random.normal(k7, (2, 64, 64, 64), dtype=jnp.bfloat16)  # 1 MiB
    t_b = jax.random.normal(k8, (2, 64, 64, 64), dtype=jnp.bfloat16)
    loss_b = jax.block_until_ready(mse_loss_pallas(x_b, t_b))
    ref_b = jnp.mean((x_b.astype(jnp.float32) - t_b.astype(jnp.float32)) ** 2)
    assert jnp.allclose(loss_b, ref_b, rtol=1e-4, atol=1e-6), (loss_b, ref_b)

    # --- 5) Gradient through the Pallas path (custom VJP) --------------------
    def loss_fn(xx):
        mm = ContentLoss(t_r)
        mm(xx)
        return mm.loss

    g = jax.block_until_ready(jax.grad(loss_fn)(x_r))
    g_ref = 2.0 * (x_r - t_r) / x_r.size
    assert jnp.allclose(g, g_ref, rtol=1e-4, atol=1e-8), "grad mismatch"

    print("KERNEL_OK")
</pallas_src>

<mosaic_0001>
module attributes {stable_mosaic.version = 11 : i64} {
  func.func @kernel(%arg0: i32, %arg1: memref<512x128xf32, #tpu.memory_space<vmem>>, %arg2: memref<512x128xf32, #tpu.memory_space<vmem>>, %arg3: memref<8x128xf32, #tpu.memory_space<vmem>>) attributes {dimension_semantics = [#tpu.dimension_semantics<parallel>], iteration_bounds = array<i64: 8>, scalar_prefetch = 0 : i64, scratch_operands = 0 : i64, tpu.core_type = #tpu.core_type<tc>, window_params = [{transform_indices = @transform_0, window_bounds = array<i64: 512, 128>}, {transform_indices = @transform_1, window_bounds = array<i64: 512, 128>}, {transform_indices = @transform_2, window_bounds = array<i64: 8, 128>}]} {
    %cst = arith.constant 0.000000e+00 : f32
    %0 = vector.broadcast %cst : f32 to vector<8x128xf32>
    %c0_i32 = arith.constant 0 : i32
    %c64_i32 = arith.constant 64 : i32
    %1 = arith.muli %c0_i32, %c64_i32 : i32
    %2 = tpu.assume_multiple %1, 64 : i32
    %3 = arith.index_cast %2 : i32 to index
    %c0 = arith.constant 0 : index
    %4 = vector.load %arg1[%3, %c0] : memref<512x128xf32, #tpu.memory_space<vmem>>, vector<64x128xf32>
    %5 = arith.index_cast %2 : i32 to index
    %c0_0 = arith.constant 0 : index
    %6 = vector.load %arg2[%5, %c0_0] : memref<512x128xf32, #tpu.memory_space<vmem>>, vector<64x128xf32>
    %7 = arith.subf %4, %6 : vector<64x128xf32>
    %8 = arith.mulf %7, %7 : vector<64x128xf32>
    %9 = vector.extract_strided_slice %8 {offsets = [0, 0], sizes = [32, 128], strides = [1, 1]} : vector<64x128xf32> to vector<32x128xf32>
    %10 = vector.extract_strided_slice %8 {offsets = [32, 0], sizes = [32, 128], strides = [1, 1]} : vector<64x128xf32> to vector<32x128xf32>
    %11 = arith.addf %9, %10 : vector<32x128xf32>
    %12 = vector.extract_strided_slice %11 {offsets = [0, 0], sizes = [16, 128], strides = [1, 1]} : vector<32x128xf32> to vector<16x128xf32>
    %13 = vector.extract_strided_slice %11 {offsets = [16, 0], sizes = [16, 128], strides = [1, 1]} : vector<32x128xf32> to vector<16x128xf32>
    %14 = arith.addf %12, %13 : vector<16x128xf32>
    %15 = vector.extract_strided_slice %14 {offsets = [0, 0], sizes = [8, 128], strides = [1, 1]} : vector<16x128xf32> to vector<8x128xf32>
    %16 = vector.extract_strided_slice %14 {offsets = [8, 0], sizes = [8, 128], strides = [1, 1]} : vector<16x128xf32> to vector<8x128xf32>
    %17 = arith.addf %15, %16 : vector<8x128xf32>
    %18 = arith.addf %0, %17 : vector<8x128xf32>
    %c1_i32 = arith.constant 1 : i32
    %c64_i32_1 = arith.constant 64 : i32
    %19 = arith.muli %c1_i32, %c64_i32_1 : i32
    %20 = tpu.assume_multiple %19, 64 : i32
    %21 = arith.index_cast %20 : i32 to index
    %c0_2 = arith.constant 0 : index
    %22 = vector.load %arg1[%21, %c0_2] : memref<512x128xf32, #tpu.memory_space<vmem>>, vector<64x128xf32>
    %23 = arith.index_cast %20 : i32 to index
    %c0_3 = arith.constant 0 : index
    %24 = vector.load %arg2[%23, %c0_3] : memref<512x128xf32, #tpu.memory_space<vmem>>, vector<64x128xf32>
    %25 = arith.subf %22, %24 : vector<64x128xf32>
    %26 = arith.mulf %25, %25 : vector<64x128xf32>
    %27 = vector.extract_strided_slice %26 {offsets = [0, 0], sizes = [32, 128], strides = [1, 1]} : vector<64x128xf32> to vector<32x128xf32>
    %28 = vector.extract_strided_slice %26 {offsets = [32, 0], sizes = [32, 128], strides = [1, 1]} : vector<64x128xf32> to vector<32x128xf32>
    %29 = arith.addf %27, %28 : vector<32x128xf32>
    %30 = vector.extract_strided_slice %29 {offsets = [0, 0], sizes = [16, 128], strides = [1, 1]} : vector<32x128xf32> to vector<16x128xf32>
    %31 = vector.extract_strided_slice %29 {offsets = [16, 0], sizes = [16, 128], strides = [1, 1]} : vector<32x128xf32> to vector<16x128xf32>
    %32 = arith.addf %30, %31 : vector<16x128xf32>
    %33 = vector.extract_strided_slice %32 {offsets = [0, 0], sizes = [8, 128], strides = [1, 1]} : vector<16x128xf32> to vector<8x128xf32>
    %34 = vector.extract_strided_slice %32 {offsets = [8, 0], sizes = [8, 128], strides = [1, 1]} : vector<16x128xf32> to vector<8x128xf32>
    %35 = arith.addf %33, %34 : vector<8x128xf32>
    %36 = arith.addf %18, %35 : vector<8x128xf32>
    %c2_i32 = arith.constant 2 : i32
    %c64_i32_4 = arith.constant 64 : i32
    %37 = arith.muli %c2_i32, %c64_i32_4 : i32
    %38 = tpu.assume_multiple %37, 64 : i32
    %39 = arith.index_cast %38 : i32 to index
    %c0_5 = arith.constant 0 : index
    %40 = vector.load %arg1[%39, %c0_5] : memref<512x128xf32, #tpu.memory_space<vmem>>, vector<64x128xf32>
    %41 = arith.index_cast %38 : i32 to index
    %c0_6 = arith.constant 0 : index
    %42 = vector.load %arg2[%41, %c0_6] : memref<512x128xf32, #tpu.memory_space<vmem>>, vector<64x128xf32>
    %43 = arith.subf %40, %42 : vector<64x128xf32>
    %44 = arith.mulf %43, %43 : vector<64x128xf32>
    %45 = vector.extract_strided_slice %44 {offsets = [0, 0], sizes = [32, 128], strides = [1, 1]} : vector<64x128xf32> to vector<32x128xf32>
    %46 = vector.extract_strided_slice %44 {offsets = [32, 0], sizes = [32, 128], strides = [1, 1]} : vector<64x128xf32> to vector<32x128xf32>
    %47 = arith.addf %45, %46 : vector<32x128xf32>
    %48 = vector.extract_strided_slice %47 {offsets = [0, 0], sizes = [16, 128], strides = [1, 1]} : vector<32x128xf32> to vector<16x128xf32>
    %49 = vector.extract_strided_slice %47 {offsets = [16, 0], sizes = [16, 128], strides = [1, 1]} : vector<32x128xf32> to vector<16x128xf32>
    %50 = arith.addf %48, %49 : vector<16x128xf32>
    %51 = vector.extract_strided_slice %50 {offsets = [0, 0], sizes = [8, 128], strides = [1, 1]} : vector<16x128xf32> to vector<8x128xf32>
    %52 = vector.extract_strided_slice %50 {offsets = [8, 0], sizes = [8, 128], strides = [1, 1]} : vector<16x128xf32> to vector<8x128xf32>
    %53 = arith.addf %51, %52 : vector<8x128xf32>
    %54 = arith.addf %36, %53 : vector<8x128xf32>
    %c3_i32 = arith.constant 3 : i32
    %c64_i32_7 = arith.constant 64 : i32
    %55 = arith.muli %c3_i32, %c64_i32_7 : i32
    %56 = tpu.assume_multiple %55, 64 : i32
    %57 = arith.index_cast %56 : i32 to index
    %c0_8 = arith.constant 0 : index
    %58 = vector.load %arg1[%57, %c0_8] : memref<512x128xf32, #tpu.memory_space<vmem>>, vector<64x128xf32>
    %59 = arith.index_cast %56 : i32 to index
    %c0_9 = arith.constant 0 : index
    %60 = vector.load %arg2[%59, %c0_9] : memref<512x128xf32, #tpu.memory_space<vmem>>, vector<64x128xf32>
    %61 = arith.subf %58, %60 : vector<64x128xf32>
    %62 = arith.mulf %61, %61 : vector<64x128xf32>
    %63 = vector.extract_strided_slice %62 {offsets = [0, 0], sizes = [32, 128], strides = [1, 1]} : vector<64x128xf32> to vector<32x128xf32>
    %64 = vector.extract_strided_slice %62 {offsets = [32, 0], sizes = [32, 128], strides = [1, 1]} : vector<64x128xf32> to vector<32x128xf32>
    %65 = arith.addf %63, %64 : vector<32x128xf32>
    %66 = vector.extract_strided_slice %65 {offsets = [0, 0], sizes = [16, 128], strides = [1, 1]} : vector<32x128xf32> to vector<16x128xf32>
    %67 = vector.extract_strided_slice %65 {offsets = [16, 0], sizes = [16, 128], strides = [1, 1]} : vector<32x128xf32> to vector<16x128xf32>
    %68 = arith.addf %66, %67 : vector<16x128xf32>
    %69 = vector.extract_strided_slice %68 {offsets = [0, 0], sizes = [8, 128], strides = [1, 1]} : vector<16x128xf32> to vector<8x128xf32>
    %70 = vector.extract_strided_slice %68 {offsets = [8, 0], sizes = [8, 128], strides = [1, 1]} : vector<16x128xf32> to vector<8x128xf32>
    %71 = arith.addf %69, %70 : vector<8x128xf32>
    %72 = arith.addf %54, %71 : vector<8x128xf32>
    %c4_i32 = arith.constant 4 : i32
    %c64_i32_10 = arith.constant 64 : i32
    %73 = arith.muli %c4_i32, %c64_i32_10 : i32
    %74 = tpu.assume_multiple %73, 64 : i32
    %75 = arith.index_cast %74 : i32 to index
    %c0_11 = arith.constant 0 : index
    %76 = vector.load %arg1[%75, %c0_11] : memref<512x128xf32, #tpu.memory_space<vmem>>, vector<64x128xf32>
    %77 = arith.index_cast %74 : i32 to index
    %c0_12 = arith.constant 0 : index
    %78 = vector.load %arg2[%77, %c0_12] : memref<512x128xf32, #tpu.memory_space<vmem>>, vector<64x128xf32>
    %79 = arith.subf %76, %78 : vector<64x128xf32>
    %80 = arith.mulf %79, %79 : vector<64x128xf32>
    %81 = vector.extract_strided_slice %80 {offsets = [0, 0], sizes = [32, 128], strides = [1, 1]} : vector<64x128xf32> to vector<32x128xf32>
    %82 = vector.extract_strided_slice %80 {offsets = [32, 0], sizes = [32, 128], strides = [1, 1]} : vector<64x128xf32> to vector<32x128xf32>
    %83 = arith.addf %81, %82 : vector<32x128xf32>
    %84 = vector.extract_strided_slice %83 {offsets = [0, 0], sizes = [16, 128], strides = [1, 1]} : vector<32x128xf32> to vector<16x128xf32>
    %85 = vector.extract_strided_slice %83 {offsets = [16, 0], sizes = [16, 128], strides = [1, 1]} : vector<32x128xf32> to vector<16x128xf32>
    %86 = arith.addf %84, %85 : vector<16x128xf32>
    %87 = vector.extract_strided_slice %86 {offsets = [0, 0], sizes = [8, 128], strides = [1, 1]} : vector<16x128xf32> to vector<8x128xf32>
    %88 = vector.extract_strided_slice %86 {offsets = [8, 0], sizes = [8, 128], strides = [1, 1]} : vector<16x128xf32> to vector<8x128xf32>
    %89 = arith.addf %87, %88 : vector<8x128xf32>
    %90 = arith.addf %72, %89 : vector<8x128xf32>
    %c5_i32 = arith.constant 5 : i32
    %c64_i32_13 = arith.constant 64 : i32
    %91 = arith.muli %c5_i32, %c64_i32_13 : i32
    %92 = tpu.assume_multiple %91, 64 : i32
    %93 = arith.index_cast %92 : i32 to index
    %c0_14 = arith.constant 0 : index
    %94 = vector.load %arg1[%93, %c0_14] : memref<512x128xf32, #tpu.memory_space<vmem>>, vector<64x128xf32>
    %95 = arith.index_cast %92 : i32 to index
    %c0_15 = arith.constant 0 : index
    %96 = vector.load %arg2[%95, %c0_15] : memref<512x128xf32, #tpu.memory_space<vmem>>, vector<64x128xf32>
    %97 = arith.subf %94, %96 : vector<64x128xf32>
    %98 = arith.mulf %97, %97 : vector<64x128xf32>
    %99 = vector.extract_strided_slice %98 {offsets = [0, 0], sizes = [32, 128], strides = [1, 1]} : vector<64x128xf32> to vector<32x128xf32>
    %100 = vector.extract_strided_slice %98 {offsets = [32, 0], sizes = [32, 128], strides = [1, 1]} : vector<64x128xf32> to vector<32x128xf32>
    %101 = arith.addf %99, %100 : vector<32x128xf32>
    %102 = vector.extract_strided_slice %101 {offsets = [0, 0], sizes = [16, 128], strides = [1, 1]} : vector<32x128xf32> to vector<16x128xf32>
    %103 = vector.extract_strided_slice %101 {offsets = [16, 0], sizes = [16, 128], strides = [1, 1]} : vector<32x128xf32> to vector<16x128xf32>
    %104 = arith.addf %102, %103 : vector<16x128xf32>
    %105 = vector.extract_strided_slice %104 {offsets = [0, 0], sizes = [8, 128], strides = [1, 1]} : vector<16x128xf32> to vector<8x128xf32>
    %106 = vector.extract_strided_slice %104 {offsets = [8, 0], sizes = [8, 128], strides = [1, 1]} : vector<16x128xf32> to vector<8x128xf32>
    %107 = arith.addf %105, %106 : vector<8x128xf32>
    %108 = arith.addf %90, %107 : vector<8x128xf32>
    %c6_i32 = arith.constant 6 : i32
    %c64_i32_16 = arith.constant 64 : i32
    %109 = arith.muli %c6_i32, %c64_i32_16 : i32
    %110 = tpu.assume_multiple %109, 64 : i32
    %111 = arith.index_cast %110 : i32 to index
    %c0_17 = arith.constant 0 : index
    %112 = vector.load %arg1[%111, %c0_17] : memref<512x128xf32, #tpu.memory_space<vmem>>, vector<64x128xf32>
    %113 = arith.index_cast %110 : i32 to index
    %c0_18 = arith.constant 0 : index
    %114 = vector.load %arg2[%113, %c0_18] : memref<512x128xf32, #tpu.memory_space<vmem>>, vector<64x128xf32>
    %115 = arith.subf %112, %114 : vector<64x128xf32>
    %116 = arith.mulf %115, %115 : vector<64x128xf32>
    %117 = vector.extract_strided_slice %116 {offsets = [0, 0], sizes = [32, 128], strides = [1, 1]} : vector<64x128xf32> to vector<32x128xf32>
    %118 = vector.extract_strided_slice %116 {offsets = [32, 0], sizes = [32, 128], strides = [1, 1]} : vector<64x128xf32> to vector<32x128xf32>
    %119 = arith.addf %117, %118 : vector<32x128xf32>
    %120 = vector.extract_strided_slice %119 {offsets = [0, 0], sizes = [16, 128], strides = [1, 1]} : vector<32x128xf32> to vector<16x128xf32>
    %121 = vector.extract_strided_slice %119 {offsets = [16, 0], sizes = [16, 128], strides = [1, 1]} : vector<32x128xf32> to vector<16x128xf32>
    %122 = arith.addf %120, %121 : vector<16x128xf32>
    %123 = vector.extract_strided_slice %122 {offsets = [0, 0], sizes = [8, 128], strides = [1, 1]} : vector<16x128xf32> to vector<8x128xf32>
    %124 = vector.extract_strided_slice %122 {offsets = [8, 0], sizes = [8, 128], strides = [1, 1]} : vector<16x128xf32> to vector<8x128xf32>
    %125 = arith.addf %123, %124 : vector<8x128xf32>
    %126 = arith.addf %108, %125 : vector<8x128xf32>
    %c7_i32 = arith.constant 7 : i32
    %c64_i32_19 = arith.constant 64 : i32
    %127 = arith.muli %c7_i32, %c64_i32_19 : i32
    %128 = tpu.assume_multiple %127, 64 : i32
    %129 = arith.index_cast %128 : i32 to index
    %c0_20 = arith.constant 0 : index
    %130 = vector.load %arg1[%129, %c0_20] : memref<512x128xf32, #tpu.memory_space<vmem>>, vector<64x128xf32>
    %131 = arith.index_cast %128 : i32 to index
    %c0_21 = arith.constant 0 : index
    %132 = vector.load %arg2[%131, %c0_21] : memref<512x128xf32, #tpu.memory_space<vmem>>, vector<64x128xf32>
    %133 = arith.subf %130, %132 : vector<64x128xf32>
    %134 = arith.mulf %133, %133 : vector<64x128xf32>
    %135 = vector.extract_strided_slice %134 {offsets = [0, 0], sizes = [32, 128], strides = [1, 1]} : vector<64x128xf32> to vector<32x128xf32>
    %136 = vector.extract_strided_slice %134 {offsets = [32, 0], sizes = [32, 128], strides = [1, 1]} : vector<64x128xf32> to vector<32x128xf32>
    %137 = arith.addf %135, %136 : vector<32x128xf32>
    %138 = vector.extract_strided_slice %137 {offsets = [0, 0], sizes = [16, 128], strides = [1, 1]} : vector<32x128xf32> to vector<16x128xf32>
    %139 = vector.extract_strided_slice %137 {offsets = [16, 0], sizes = [16, 128], strides = [1, 1]} : vector<32x128xf32> to vector<16x128xf32>
    %140 = arith.addf %138, %139 : vector<16x128xf32>
    %141 = vector.extract_strided_slice %140 {offsets = [0, 0], sizes = [8, 128], strides = [1, 1]} : vector<16x128xf32> to vector<8x128xf32>
    %142 = vector.extract_strided_slice %140 {offsets = [8, 0], sizes = [8, 128], strides = [1, 1]} : vector<16x128xf32> to vector<8x128xf32>
    %143 = arith.addf %141, %142 : vector<8x128xf32>
    %144 = arith.addf %126, %143 : vector<8x128xf32>
    %c8_i32 = arith.constant 8 : i32
    %c0_22 = arith.constant 0 : index
    %c0_23 = arith.constant 0 : index
    %145 = vector.load %arg3[%c0_22, %c0_23] : memref<8x128xf32, #tpu.memory_space<vmem>>, vector<8x128xf32>
    tpu.vector_store %arg3[%c0_22, %c0_23], %144 {strides = array<i32>} : memref<8x128xf32, #tpu.memory_space<vmem>>, vector<8x128xf32>,
    return
  }
  func.func @transform_0(%arg0: i32) -> (i32, i32) {
    %c0_i32 = arith.constant 0 : i32
    %c0_i32_0 = arith.constant 0 : i32
    return %arg0, %c0_i32 : i32, i32
  }
  func.func @transform_1(%arg0: i32) -> (i32, i32) {
    %c0_i32 = arith.constant 0 : i32
    %c0_i32_0 = arith.constant 0 : i32
    return %arg0, %c0_i32 : i32, i32
  }
  func.func @transform_2(%arg0: i32) -> (i32, i32) {
    %c0_i32 = arith.constant 0 : i32
    %c0_i32_0 = arith.constant 0 : i32
    return %arg0, %c0_i32 : i32, i32
  }
}

</mosaic_0001>

<llo_original>
// kernel: tpu_custom_call.1
$region0: #{tpu_custom_call.1}
  #allocation0 [shape = 'u32[]', space=smem, size = 0x4, offset = 0x4, fixed_abs, tag = 'smem constant byte address 0x4 - core index']
  #allocation1 [shape = 'u32[72,128]{1,0:T(1,128)}', space=vmem, size = 0x9000, scoped, tag = 'internal scratch']
  %s0 = inlined_call_operand.hbm [shape: f32[4096,128], index: 0, kind: input, shape index: {}]
  %s1 = inlined_call_operand.hbm [shape: f32[4096,128], index: 1, kind: input, shape index: {}]
  %s2 = inlined_call_operand.hbm [shape: f32[64,128], index: 2, kind: output, shape index: {}]
  %s3 = sld [smem:[#allocation0]]
  $region49: #{tpu_custom_call.1} parent=0
    _
  %s5 = ssub.s32 1, %s3
  %s6 = scalar_select 0, %s5, %s3
  $region1: #{tpu_custom_call.1} parent=0
    #allocation2 [shape = 'u8[524288]{0}', space=vmem, size = 0x80000, scoped, tag = 'input window, operand 0']
    #allocation3 [shape = 's32[2]{0}', space=sflag, size = 0x8, scoped, tag = 'scoped memory for tpu_custom_call.1']
    #allocation4 [shape = 's32[2]{0}', space=sflag, size = 0x8, scoped, tag = 'scoped memory for tpu_custom_call.1']
    #allocation5 [shape = 'u8[524288]{0}', space=vmem, size = 0x80000, scoped, tag = 'input window, operand 1']
    #allocation6 [shape = 's32[2]{0}', space=sflag, size = 0x8, scoped, tag = 'scoped memory for tpu_custom_call.1']
    #allocation7 [shape = 'u8[8192]{0}', space=vmem, size = 0x2000, scoped, tag = 'output window, operand 0']
    %7 = vsyncpa [#allocation3], 0
    %s8 = scalar_lea.sflag [#allocation3], 1
    %9 = vsyncpa %s8, 0
    %10 = vsyncpa [#allocation6], 0
    %s11 = scalar_lea.sflag [#allocation6], 1
    %12 = vsyncpa %s11, 0
    %13 = vsyncpa [#allocation4], 0
    %s14 = scalar_lea.sflag [#allocation4], 1
    %15 = vsyncpa %s14, 0
    loop: start=0, step=1, limit=10
    $region2: #{tpu_custom_call.1} parent=1 // loop_pre_header
      _
    $region3: #{tpu_custom_call.1} parent=1 // loop_header
      %s17 = sphi 0, %s21
      %p18 = scmp.ge.s32.totalorder %s17, 10
      %s27 = sphi 0, %s29
      %s30 = sphi 0, %s27
      %s31 = sphi 0, %s30
      %s47 = sphi 0, %s31
      %s53 = sphi 0, %s55
      %s56 = sphi 0, %s53
      %s57 = sphi 0, %s56
      %s73 = sphi 0, %s57
      %s79 = sphi 0, %s81
      %s82 = sphi 0, %s79
      %s83 = sphi 0, %s82
      %s99 = sphi 0, %s83
    $region4: #{tpu_custom_call.1} parent=1 // loop_header_branch
      %20 = sbr.rel (%p18) target = $region8
    $region5: #{tpu_custom_call.1} parent=1 // loop_body
      %s22 = ssub.s32 %s17, 1
      %s23 = ssub.s32 %s17, 2
      %s24 = sadd.s32 %s17, 1
      %s25 = ssub.s32 %s17, %s24
      %p26 = scmp.eq.s32.totalorder %s25, 0
      %s28 = sadd.s32 %s27, 1
      %s29 = scalar_select %p26, %s27, %s28
      %p32 = pneg %p26
      %p33 = scmp.eq.s32.totalorder %s17, 7
      %p34 = por %p32, %p33
      %p35 = scmp.ne.s32.totalorder %s27, %s30
      %p36 = scmp.eq.s32.totalorder %s17, 0
      %p37 = por %p35, %p36
      %p38 = scmp.ne.s32.totalorder %s27, %s30
      %p39 = scmp.eq.s32.totalorder %s22, 7
      %p40 = por %p38, %p39
      %p41 = scmp.ne.s32.totalorder %s30, %s31
      %p42 = scmp.eq.s32.totalorder %s22, 0
      %p43 = por %p41, %p42
      %p44 = scmp.ne.s32.totalorder %s30, %s31
      %p45 = scmp.eq.s32.totalorder %s23, 7
      %p46 = por %p44, %p45
      %p48 = scmp.ne.s32.totalorder %s31, %s47
      %p49 = scmp.eq.s32.totalorder %s23, 0
      %p50 = por %p48, %p49
      %s51 = ssub.s32 %s17, %s24
      %p52 = scmp.eq.s32.totalorder %s51, 0
      %s54 = sadd.s32 %s53, 1
      %s55 = scalar_select %p52, %s53, %s54
      %p58 = pneg %p52
      %p59 = scmp.eq.s32.totalorder %s17, 7
      %p60 = por %p58, %p59
      %p61 = scmp.ne.s32.totalorder %s53, %s56
      %p62 = scmp.eq.s32.totalorder %s17, 0
      %p63 = por %p61, %p62
      %p64 = scmp.ne.s32.totalorder %s53, %s56
      %p65 = scmp.eq.s32.totalorder %s22, 7
      %p66 = por %p64, %p65
      %p67 = scmp.ne.s32.totalorder %s56, %s57
      %p68 = scmp.eq.s32.totalorder %s22, 0
      %p69 = por %p67, %p68
      %p70 = scmp.ne.s32.totalorder %s56, %s57
      %p71 = scmp.eq.s32.totalorder %s23, 7
      %p72 = por %p70, %p71
      %p74 = scmp.ne.s32.totalorder %s57, %s73
      %p75 = scmp.eq.s32.totalorder %s23, 0
      %p76 = por %p74, %p75
      %s77 = ssub.s32 %s17, %s24
      %p78 = scmp.eq.s32.totalorder %s77, 0
      %s80 = sadd.s32 %s79, 1
      %s81 = scalar_select %p78, %s79, %s80
      %p84 = pneg %p78
      %p85 = scmp.eq.s32.totalorder %s17, 7
      %p86 = por %p84, %p85
      %p87 = scmp.ne.s32.totalorder %s79, %s82
      %p88 = scmp.eq.s32.totalorder %s17, 0
      %p89 = por %p87, %p88
      %p90 = scmp.ne.s32.totalorder %s79, %s82
      %p91 = scmp.eq.s32.totalorder %s22, 7
      %p92 = por %p90, %p91
      %p93 = scmp.ne.s32.totalorder %s82, %s83
      %p94 = scmp.eq.s32.totalorder %s22, 0
      %p95 = por %p93, %p94
      %p96 = scmp.ne.s32.totalorder %s82, %s83
      %p97 = scmp.eq.s32.totalorder %s23, 7
      %p98 = por %p96, %p97
      %p100 = scmp.ne.s32.totalorder %s83, %s99
      %p101 = scmp.eq.s32.totalorder %s23, 0
      %p102 = por %p100, %p101
      %p103 = scmp.le.s32.totalorder 1, %s17
      %p104 = scmp.lt.s32.totalorder %s17, 9
      %p105 = pnand %p103, %p104
      %p106 = pneg %p105
      // Predicated region
      $region9: #{tpu_custom_call.1} parent=5 // pred_check
        _
      $region10: #{tpu_custom_call.1} parent=5 // pred_check_branch
        %108 = sbr.rel (%p105) target = $region12
      $region11: #{tpu_custom_call.1} parent=5 // pred_region
        %s109 = ssub.s32 %s17, 1
      $region12: #{tpu_custom_call.1} parent=5 // pred_fallthru
        _
      %p110 = scmp.lt.s32.totalorder %s17, 8
      // Predicated region
      $region13: #{tpu_custom_call.1} parent=5 // pred_check
        %p111 = pneg %p110
      $region14: #{tpu_custom_call.1} parent=5 // pred_check_branch
        %113 = sbr.rel (%p111) target = $region16
      $region15: #{tpu_custom_call.1} parent=5 // pred_region
        // Predicated region
        $region17: #{tpu_custom_call.1} parent=15 // pred_check
          %p114 = pneg %p37
        $region18: #{tpu_custom_call.1} parent=15 // pred_check_branch
          %116 = sbr.rel (%p114) target = $region20
        $region19: #{tpu_custom_call.1} parent=15 // pred_region
          %s117 = sand.u32 %s27, 1
          %s118 = scalar_lea.sflag [#allocation3], %s117
          %s119 = sand.u32 %s27, 1
          %s120 = smul.addr %s119, 512
          %s121 = scalar_lea.vmem [#allocation2], %s120
          %s122 = smul.u32 64, %s17
          %124 = vsyncadd %s118, 0
          %s125 = smul.addr %s122, 8
          %s126 = scalar_lea.hbm %s0, %s125
          %s127 = sshll.u32 %s126, 4
          %s128 = int_to_ptr.hbm [resolvable:$true] %s127
          %s129 = sshll.u32 %s121, 4
          %s130 = int_to_ptr.vmem [resolvable:$true] %s129
          %135 = dma.hbm_to_vmem [thread:$0]  %s128, 8192, %s130, %s118, 128, 128, 8
        $region20: #{tpu_custom_call.1} parent=15 // pred_fallthru
          _
        // Predicated region
        $region21: #{tpu_custom_call.1} parent=15 // pred_check
          %p136 = pneg %p63
        $region22: #{tpu_custom_call.1} parent=15 // pred_check_branch
          %138 = sbr.rel (%p136) target = $region24
        $region23: #{tpu_custom_call.1} parent=15 // pred_region
          %s139 = sand.u32 %s53, 1
          %s140 = scalar_lea.sflag [#allocation6], %s139
          %s141 = sand.u32 %s53, 1
          %s142 = smul.addr %s141, 512
          %s143 = scalar_lea.vmem [#allocation5], %s142
          %s144 = smul.u32 64, %s17
          %146 = vsyncadd %s140, 0
          %s147 = smul.addr %s144, 8
          %s148 = scalar_lea.hbm %s1, %s147
          %s149 = sshll.u32 %s148, 4
          %s150 = int_to_ptr.hbm [resolvable:$true] %s149
          %s151 = sshll.u32 %s143, 4
          %s152 = int_to_ptr.vmem [resolvable:$true] %s151
          %157 = dma.hbm_to_vmem [thread:$0]  %s150, 8192, %s152, %s140, 128, 128, 8
        $region24: #{tpu_custom_call.1} parent=15 // pred_fallthru
          _
      $region16: #{tpu_custom_call.1} parent=5 // pred_fallthru
        _
      %p158 = scmp.le.s32.totalorder 1, %s17
      %p159 = scmp.lt.s32.totalorder %s17, 9
      %p160 = pnand %p158, %p159
      %p161 = pneg %p160
      // Predicated region
      $region25: #{tpu_custom_call.1} parent=5 // pred_check
        _
      $region26: #{tpu_custom_call.1} parent=5 // pred_check_branch
        %163 = sbr.rel (%p160) target = $region28
      $region27: #{tpu_custom_call.1} parent=5 // pred_region
        %s164 = ssub.s32 %s17, 1
        %s165 = sand.u32 %s30, 1
        %s166 = scalar_lea.sflag [#allocation3], %s165
        %s167 = sand.u32 %s30, 1
        %s168 = smul.addr %s167, 512
        %s169 = scalar_lea.vmem [#allocation2], %s168
        // Predicated region
        $region29: #{tpu_custom_call.1} parent=27 // pred_check
          %p170 = pneg %p43
        $region30: #{tpu_custom_call.1} parent=27 // pred_check_branch
          %172 = sbr.rel (%p170) target = $region32
        $region31: #{tpu_custom_call.1} parent=27 // pred_region
          %174 = dma.done %s166, 8192
        $region32: #{tpu_custom_call.1} parent=27 // pred_fallthru
          _
        %s175 = sand.u32 %s56, 1
        %s176 = scalar_lea.sflag [#allocation6], %s175
        %s177 = sand.u32 %s56, 1
        %s178 = smul.addr %s177, 512
        %s179 = scalar_lea.vmem [#allocation5], %s178
        // Predicated region
        $region33: #{tpu_custom_call.1} parent=27 // pred_check
          %p180 = pneg %p69
        $region34: #{tpu_custom_call.1} parent=27 // pred_check_branch
          %182 = sbr.rel (%p180) target = $region36
        $region35: #{tpu_custom_call.1} parent=27 // pred_region
          %184 = dma.done %s176, 8192
        $region36: #{tpu_custom_call.1} parent=27 // pred_fallthru
          _
        %s185 = sand.u32 %s30, 1
        %s186 = scalar_lea.sflag [#allocation3], %s185
        %s187 = sand.u32 %s30, 1
        %s188 = smul.addr %s187, 512
        %s189 = scalar_lea.vmem [#allocation2], %s188
        %p190 = pneg %p43
        %p191 = pneg %p40
        %s192 = sand.u32 %s56, 1
        %s193 = scalar_lea.sflag [#allocation6], %s192
        %s194 = sand.u32 %s56, 1
        %s195 = smul.addr %s194, 512
        %s196 = scalar_lea.vmem [#allocation5], %s195
        %p197 = pneg %p69
        %p198 = pneg %p66
        %p199 = pneg %p95
        %p200 = pneg %p92
        %s201 = sand.u32 %s82, 1
        %s202 = scalar_lea.sflag [#allocation4], %s201
        %s203 = sand.u32 %s82, 1
        %s204 = smul.addr %s203, 8
        %s205 = scalar_lea.vmem [#allocation7], %s204
        %s206 = smul.u32 64, %s22
        %s207 = smul.u32 64, %s22
        %v208 = vld [vmem:[%s169] sm:$0xff]
        %v209 = vld [vmem:[%s169 + $0x8] sm:$0xff]
        %v210 = vld [vmem:[%s169 + $0x10] sm:$0xff]
        %v211 = vld [vmem:[%s169 + $0x18] sm:$0xff]
        %v212 = vld [vmem:[%s169 + $0x20] sm:$0xff]
        %v213 = vld [vmem:[%s169 + $0x28] sm:$0xff]
        %v214 = vld [vmem:[%s169 + $0x30] sm:$0xff]
        %v215 = vld [vmem:[%s169 + $0x38] sm:$0xff]
        %v216 = vld [vmem:[%s179] sm:$0xff]
        %v217 = vld [vmem:[%s179 + $0x8] sm:$0xff]
        %v218 = vld [vmem:[%s179 + $0x10] sm:$0xff]
        %v219 = vld [vmem:[%s179 + $0x18] sm:$0xff]
        %v220 = vld [vmem:[%s179 + $0x20] sm:$0xff]
        %v221 = vld [vmem:[%s179 + $0x28] sm:$0xff]
        %v222 = vld [vmem:[%s179 + $0x30] sm:$0xff]
        %v223 = vld [vmem:[%s179 + $0x38] sm:$0xff]
        %v224 = vsub.f32 %v208, %v216
        %v225 = vsub.f32 %v209, %v217
        %v226 = vsub.f32 %v210, %v218
        %v227 = vsub.f32 %v211, %v219
        %v228 = vsub.f32 %v212, %v220
        %v229 = vsub.f32 %v213, %v221
        %v230 = vsub.f32 %v214, %v222
        %v231 = vsub.f32 %v215, %v223
        %v232 = vmul.f32 %v224, %v224
        %v233 = vmul.f32 %v225, %v225
        %v234 = vmul.f32 %v226, %v226
        %v235 = vmul.f32 %v227, %v227
        %v236 = vmul.f32 %v228, %v228
        %v237 = vmul.f32 %v229, %v229
        %v238 = vmul.f32 %v230, %v230
        %v239 = vmul.f32 %v231, %v231
        %v240 = vadd.f32 %v232, %v236
        %v241 = vadd.f32 %v233, %v237
        %v242 = vadd.f32 %v234, %v238
        %v243 = vadd.f32 %v235, %v239
        %v244 = vadd.f32 %v240, %v242
        %v245 = vadd.f32 %v241, %v243
        %v246 = vadd.f32 %v244, %v245
        %v247 = vadd.f32 %v246, 0.0
        %s248 = scalar_lea.vmem %s169, 64 [#allocation2]
        %v249 = vld [vmem:[%s248] sm:$0xff]
        %v250 = vld [vmem:[%s248 + $0x8] sm:$0xff]
        %v251 = vld [vmem:[%s248 + $0x10] sm:$0xff]
        %v252 = vld [vmem:[%s248 + $0x18] sm:$0xff]
        %v253 = vld [vmem:[%s248 + $0x20] sm:$0xff]
        %v254 = vld [vmem:[%s248 + $0x28] sm:$0xff]
        %v255 = vld [vmem:[%s248 + $0x30] sm:$0xff]
        %v256 = vld [vmem:[%s248 + $0x38] sm:$0xff]
        %s257 = scalar_lea.vmem %s179, 64 [#allocation5]
        %v258 = vld [vmem:[%s257] sm:$0xff]
        %v259 = vld [vmem:[%s257 + $0x8] sm:$0xff]
        %v260 = vld [vmem:[%s257 + $0x10] sm:$0xff]
        %v261 = vld [vmem:[%s257 + $0x18] sm:$0xff]
        %v262 = vld [vmem:[%s257 + $0x20] sm:$0xff]
        %v263 = vld [vmem:[%s257 + $0x28] sm:$0xff]
        %v264 = vld [vmem:[%s257 + $0x30] sm:$0xff]
        %v265 = vld [vmem:[%s257 + $0x38] sm:$0xff]
        %v266 = vsub.f32 %v249, %v258
        %v267 = vsub.f32 %v250, %v259
        %v268 = vsub.f32 %v251, %v260
        %v269 = vsub.f32 %v252, %v261
        %v270 = vsub.f32 %v253, %v262
        %v271 = vsub.f32 %v254, %v263
        %v272 = vsub.f32 %v255, %v264
        %v273 = vsub.f32 %v256, %v265
        %v274 = vmul.f32 %v266, %v266
        %v275 = vmul.f32 %v267, %v267
        %v276 = vmul.f32 %v268, %v268
        %v277 = vmul.f32 %v269, %v269
        %v278 = vmul.f32 %v270, %v270
        %v279 = vmul.f32 %v271, %v271
        %v280 = vmul.f32 %v272, %v272
        %v281 = vmul.f32 %v273, %v273
        %v282 = vadd.f32 %v274, %v278
        %v283 = vadd.f32 %v275, %v279
        %v284 = vadd.f32 %v276, %v280
        %v285 = vadd.f32 %v277, %v281
        %v286 = vadd.f32 %v282, %v284
        %v287 = vadd.f32 %v283, %v285
        %v288 = vadd.f32 %v286, %v287
        %v289 = vadd.f32 %v247, %v288
        %s290 = scalar_lea.vmem %s169, 128 [#allocation2]
        %v291 = vld [vmem:[%s290] sm:$0xff]
        %v292 = vld [vmem:[%s290 + $0x8] sm:$0xff]
        %v293 = vld [vmem:[%s290 + $0x10] sm:$0xff]
        %v294 = vld [vmem:[%s290 + $0x18] sm:$0xff]
        %v295 = vld [vmem:[%s290 + $0x20] sm:$0xff]
        %v296 = vld [vmem:[%s290 + $0x28] sm:$0xff]
        %v297 = vld [vmem:[%s290 + $0x30] sm:$0xff]
        %v298 = vld [vmem:[%s290 + $0x38] sm:$0xff]
        %s299 = scalar_lea.vmem %s179, 128 [#allocation5]
        %v300 = vld [vmem:[%s299] sm:$0xff]
        %v301 = vld [vmem:[%s299 + $0x8] sm:$0xff]
        %v302 = vld [vmem:[%s299 + $0x10] sm:$0xff]
        %v303 = vld [vmem:[%s299 + $0x18] sm:$0xff]
        %v304 = vld [vmem:[%s299 + $0x20] sm:$0xff]
        %v305 = vld [vmem:[%s299 + $0x28] sm:$0xff]
        %v306 = vld [vmem:[%s299 + $0x30] sm:$0xff]
        %v307 = vld [vmem:[%s299 + $0x38] sm:$0xff]
        %v308 = vsub.f32 %v291, %v300
        %v309 = vsub.f32 %v292, %v301
        %v310 = vsub.f32 %v293, %v302
        %v311 = vsub.f32 %v294, %v303
        %v312 = vsub.f32 %v295, %v304
        %v313 = vsub.f32 %v296, %v305
        %v314 = vsub.f32 %v297, %v306
        %v315 = vsub.f32 %v298, %v307
        %v316 = vmul.f32 %v308, %v308
        %v317 = vmul.f32 %v309, %v309
        %v318 = vmul.f32 %v310, %v310
        %v319 = vmul.f32 %v311, %v311
        %v320 = vmul.f32 %v312, %v312
        %v321 = vmul.f32 %v313, %v313
        %v322 = vmul.f32 %v314, %v314
        %v323 = vmul.f32 %v315, %v315
        %v324 = vadd.f32 %v316, %v320
        %v325 = vadd.f32 %v317, %v321
        %v326 = vadd.f32 %v318, %v322
        %v327 = vadd.f32 %v319, %v323
        %v328 = vadd.f32 %v324, %v326
        %v329 = vadd.f32 %v325, %v327
        %v330 = vadd.f32 %v328, %v329
        %v331 = vadd.f32 %v289, %v330
        %s332 = scalar_lea.vmem %s169, 192 [#allocation2]
        %v333 = vld [vmem:[%s332] sm:$0xff]
        %v334 = vld [vmem:[%s332 + $0x8] sm:$0xff]
        %v335 = vld [vmem:[%s332 + $0x10] sm:$0xff]
        %v336 = vld [vmem:[%s332 + $0x18] sm:$0xff]
        %v337 = vld [vmem:[%s332 + $0x20] sm:$0xff]
        %v338 = vld [vmem:[%s332 + $0x28] sm:$0xff]
        %v339 = vld [vmem:[%s332 + $0x30] sm:$0xff]
        %v340 = vld [vmem:[%s332 + $0x38] sm:$0xff]
        %s341 = scalar_lea.vmem %s179, 192 [#allocation5]
        %v342 = vld [vmem:[%s341] sm:$0xff]
        %v343 = vld [vmem:[%s341 + $0x8] sm:$0xff]
        %v344 = vld [vmem:[%s341 + $0x10] sm:$0xff]
        %v345 = vld [vmem:[%s341 + $0x18] sm:$0xff]
        %v346 = vld [vmem:[%s341 + $0x20] sm:$0xff]
        %v347 = vld [vmem:[%s341 + $0x28] sm:$0xff]
        %v348 = vld [vmem:[%s341 + $0x30] sm:$0xff]
        %v349 = vld [vmem:[%s341 + $0x38] sm:$0xff]
        %v350 = vsub.f32 %v333, %v342
        %v351 = vsub.f32 %v334, %v343
        %v352 = vsub.f32 %v335, %v344
        %v353 = vsub.f32 %v336, %v345
        %v354 = vsub.f32 %v337, %v346
        %v355 = vsub.f32 %v338, %v347
        %v356 = vsub.f32 %v339, %v348
        %v357 = vsub.f32 %v340, %v349
        %v358 = vmul.f32 %v350, %v350
        %v359 = vmul.f32 %v351, %v351
        %v360 = vmul.f32 %v352, %v352
        %v361 = vmul.f32 %v353, %v353
        %v362 = vmul.f32 %v354, %v354
        %v363 = vmul.f32 %v355, %v355
        %v364 = vmul.f32 %v356, %v356
        %v365 = vmul.f32 %v357, %v357
        %v366 = vadd.f32 %v358, %v362
        %v367 = vadd.f32 %v359, %v363
        %v368 = vadd.f32 %v360, %v364
        %v369 = vadd.f32 %v361, %v365
        %v370 = vadd.f32 %v366, %v368
        %v371 = vadd.f32 %v367, %v369
        %v372 = vadd.f32 %v370, %v371
        %v373 = vadd.f32 %v331, %v372
        %s374 = scalar_lea.vmem %s169, 256 [#allocation2]
        %v375 = vld [vmem:[%s374] sm:$0xff]
        %v376 = vld [vmem:[%s374 + $0x8] sm:$0xff]
        %v377 = vld [vmem:[%s374 + $0x10] sm:$0xff]
        %v378 = vld [vmem:[%s374 + $0x18] sm:$0xff]
        %v379 = vld [vmem:[%s374 + $0x20] sm:$0xff]
        %v380 = vld [vmem:[%s374 + $0x28] sm:$0xff]
        %v381 = vld [vmem:[%s374 + $0x30] sm:$0xff]
        %v382 = vld [vmem:[%s374 + $0x38] sm:$0xff]
        %s383 = scalar_lea.vmem %s179, 256 [#allocation5]
        %v384 = vld [vmem:[%s383] sm:$0xff]
        %v385 = vld [vmem:[%s383 + $0x8] sm:$0xff]
        %v386 = vld [vmem:[%s383 + $0x10] sm:$0xff]
        %v387 = vld [vmem:[%s383 + $0x18] sm:$0xff]
        %v388 = vld [vmem:[%s383 + $0x20] sm:$0xff]
        %v389 = vld [vmem:[%s383 + $0x28] sm:$0xff]
        %v390 = vld [vmem:[%s383 + $0x30] sm:$0xff]
        %v391 = vld [vmem:[%s383 + $0x38] sm:$0xff]
        %v392 = vsub.f32 %v375, %v384
        %v393 = vsub.f32 %v376, %v385
        %v394 = vsub.f32 %v377, %v386
        %v395 = vsub.f32 %v378, %v387
        %v396 = vsub.f32 %v379, %v388
        %v397 = vsub.f32 %v380, %v389
        %v398 = vsub.f32 %v381, %v390
        %v399 = vsub.f32 %v382, %v391
        %v400 = vmul.f32 %v392, %v392
        %v401 = vmul.f32 %v393, %v393
        %v402 = vmul.f32 %v394, %v394
        %v403 = vmul.f32 %v395, %v395
        %v404 = vmul.f32 %v396, %v396
        %v405 = vmul.f32 %v397, %v397
        %v406 = vmul.f32 %v398, %v398
        %v407 = vmul.f32 %v399, %v399
        %v408 = vadd.f32 %v400, %v404
        %v409 = vadd.f32 %v401, %v405
        %v410 = vadd.f32 %v402, %v406
        %v411 = vadd.f32 %v403, %v407
        %v412 = vadd.f32 %v408, %v410
        %v413 = vadd.f32 %v409, %v411
        %v414 = vadd.f32 %v412, %v413
        %v415 = vadd.f32 %v373, %v414
        %s416 = scalar_lea.vmem %s169, 320 [#allocation2]
        %v417 = vld [vmem:[%s416] sm:$0xff]
        %v418 = vld [vmem:[%s416 + $0x8] sm:$0xff]
        %v419 = vld [vmem:[%s416 + $0x10] sm:$0xff]
        %v420 = vld [vmem:[%s416 + $0x18] sm:$0xff]
        %v421 = vld [vmem:[%s416 + $0x20] sm:$0xff]
        %v422 = vld [vmem:[%s416 + $0x28] sm:$0xff]
        %v423 = vld [vmem:[%s416 + $0x30] sm:$0xff]
        %v424 = vld [vmem:[%s416 + $0x38] sm:$0xff]
        %s425 = scalar_lea.vmem %s179, 320 [#allocation5]
        %v426 = vld [vmem:[%s425] sm:$0xff]
        %v427 = vld [vmem:[%s425 + $0x8] sm:$0xff]
        %v428 = vld [vmem:[%s425 + $0x10] sm:$0xff]
        %v429 = vld [vmem:[%s425 + $0x18] sm:$0xff]
        %v430 = vld [vmem:[%s425 + $0x20] sm:$0xff]
        %v431 = vld [vmem:[%s425 + $0x28] sm:$0xff]
        %v432 = vld [vmem:[%s425 + $0x30] sm:$0xff]
        %v433 = vld [vmem:[%s425 + $0x38] sm:$0xff]
        %v434 = vsub.f32 %v417, %v426
        %v435 = vsub.f32 %v418, %v427
        %v436 = vsub.f32 %v419, %v428
        %v437 = vsub.f32 %v420, %v429
        %v438 = vsub.f32 %v421, %v430
        %v439 = vsub.f32 %v422, %v431
        %v440 = vsub.f32 %v423, %v432
        %v441 = vsub.f32 %v424, %v433
        %v442 = vmul.f32 %v434, %v434
        %v443 = vmul.f32 %v435, %v435
        %v444 = vmul.f32 %v436, %v436
        %v445 = vmul.f32 %v437, %v437
        %v446 = vmul.f32 %v438, %v438
        %v447 = vmul.f32 %v439, %v439
        %v448 = vmul.f32 %v440, %v440
        %v449 = vmul.f32 %v441, %v441
        %v450 = vadd.f32 %v442, %v446
        %v451 = vadd.f32 %v443, %v447
        %v452 = vadd.f32 %v444, %v448
        %v453 = vadd.f32 %v445, %v449
        %v454 = vadd.f32 %v450, %v452
        %v455 = vadd.f32 %v451, %v453
        %v456 = vadd.f32 %v454, %v455
        %v457 = vadd.f32 %v415, %v456
        %s458 = scalar_lea.vmem %s169, 384 [#allocation2]
        %v459 = vld [vmem:[%s458] sm:$0xff]
        %v460 = vld [vmem:[%s458 + $0x8] sm:$0xff]
        %v461 = vld [vmem:[%s458 + $0x10] sm:$0xff]
        %v462 = vld [vmem:[%s458 + $0x18] sm:$0xff]
        %v463 = vld [vmem:[%s458 + $0x20] sm:$0xff]
        %v464 = vld [vmem:[%s458 + $0x28] sm:$0xff]
        %v465 = vld [vmem:[%s458 + $0x30] sm:$0xff]
        %v466 = vld [vmem:[%s458 + $0x38] sm:$0xff]
        %s467 = scalar_lea.vmem %s179, 384 [#allocation5]
        %v468 = vld [vmem:[%s467] sm:$0xff]
        %v469 = vld [vmem:[%s467 + $0x8] sm:$0xff]
        %v470 = vld [vmem:[%s467 + $0x10] sm:$0xff]
        %v471 = vld [vmem:[%s467 + $0x18] sm:$0xff]
        %v472 = vld [vmem:[%s467 + $0x20] sm:$0xff]
        %v473 = vld [vmem:[%s467 + $0x28] sm:$0xff]
        %v474 = vld [vmem:[%s467 + $0x30] sm:$0xff]
        %v475 = vld [vmem:[%s467 + $0x38] sm:$0xff]
        %v476 = vsub.f32 %v459, %v468
        %v477 = vsub.f32 %v460, %v469
        %v478 = vsub.f32 %v461, %v470
        %v479 = vsub.f32 %v462, %v471
        %v480 = vsub.f32 %v463, %v472
        %v481 = vsub.f32 %v464, %v473
        %v482 = vsub.f32 %v465, %v474
        %v483 = vsub.f32 %v466, %v475
        %v484 = vmul.f32 %v476, %v476
        %v485 = vmul.f32 %v477, %v477
        %v486 = vmul.f32 %v478, %v478
        %v487 = vmul.f32 %v479, %v479
        %v488 = vmul.f32 %v480, %v480
        %v489 = vmul.f32 %v481, %v481
        %v490 = vmul.f32 %v482, %v482
        %v491 = vmul.f32 %v483, %v483
        %v492 = vadd.f32 %v484, %v488
        %v493 = vadd.f32 %v485, %v489
        %v494 = vadd.f32 %v486, %v490
        %v495 = vadd.f32 %v487, %v491
        %v496 = vadd.f32 %v492, %v494
        %v497 = vadd.f32 %v493, %v495
        %v498 = vadd.f32 %v496, %v497
        %v499 = vadd.f32 %v457, %v498
        %s500 = scalar_lea.vmem %s169, 448 [#allocation2]
        %v501 = vld [vmem:[%s500] sm:$0xff]
        %v502 = vld [vmem:[%s500 + $0x8] sm:$0xff]
        %v503 = vld [vmem:[%s500 + $0x10] sm:$0xff]
        %v504 = vld [vmem:[%s500 + $0x18] sm:$0xff]
        %v505 = vld [vmem:[%s500 + $0x20] sm:$0xff]
        %v506 = vld [vmem:[%s500 + $0x28] sm:$0xff]
        %v507 = vld [vmem:[%s500 + $0x30] sm:$0xff]
        %v508 = vld [vmem:[%s500 + $0x38] sm:$0xff]
        %s509 = scalar_lea.vmem %s179, 448 [#allocation5]
        %v510 = vld [vmem:[%s509] sm:$0xff]
        %v511 = vld [vmem:[%s509 + $0x8] sm:$0xff]
        %v512 = vld [vmem:[%s509 + $0x10] sm:$0xff]
        %v513 = vld [vmem:[%s509 + $0x18] sm:$0xff]
        %v514 = vld [vmem:[%s509 + $0x20] sm:$0xff]
        %v515 = vld [vmem:[%s509 + $0x28] sm:$0xff]
        %v516 = vld [vmem:[%s509 + $0x30] sm:$0xff]
        %v517 = vld [vmem:[%s509 + $0x38] sm:$0xff]
        %v518 = vsub.f32 %v501, %v510
        %v519 = vsub.f32 %v502, %v511
        %v520 = vsub.f32 %v503, %v512
        %v521 = vsub.f32 %v504, %v513
        %v522 = vsub.f32 %v505, %v514
        %v523 = vsub.f32 %v506, %v515
        %v524 = vsub.f32 %v507, %v516
        %v525 = vsub.f32 %v508, %v517
        %v526 = vmul.f32 %v518, %v518
        %v527 = vmul.f32 %v519, %v519
        %v528 = vmul.f32 %v520, %v520
        %v529 = vmul.f32 %v521, %v521
        %v530 = vmul.f32 %v522, %v522
        %v531 = vmul.f32 %v523, %v523
        %v532 = vmul.f32 %v524, %v524
        %v533 = vmul.f32 %v525, %v525
        %v534 = vadd.f32 %v526, %v530
        %v535 = vadd.f32 %v527, %v531
        %v536 = vadd.f32 %v528, %v532
        %v537 = vadd.f32 %v529, %v533
        %v538 = vadd.f32 %v534, %v536
        %v539 = vadd.f32 %v535, %v537
        %v540 = vadd.f32 %v538, %v539
        %v541 = vadd.f32 %v499, %v540
        %542 = vst [vmem:[%s205] sm:$0xff] %v541
        %s543 = sand.u32 %s82, 1
        %s544 = scalar_lea.sflag [#allocation4], %s543
        %s545 = sand.u32 %s82, 1
        %s546 = smul.addr %s545, 8
        %s547 = scalar_lea.vmem [#allocation7], %s546
        // Predicated region
        $region37: #{tpu_custom_call.1} parent=27 // pred_check
          %p548 = pneg %p92
        $region38: #{tpu_custom_call.1} parent=27 // pred_check_branch
          %550 = sbr.rel (%p548) target = $region40
        $region39: #{tpu_custom_call.1} parent=27 // pred_region
          %552 = vsyncadd %s544, 0
          %s553 = smul.addr %s22, 8
          %s554 = scalar_lea.hbm %s2, %s553
          %s556 = sshll.u32 %s547, 4
          %s557 = int_to_ptr.vmem [resolvable:$true] %s556
          %s558 = sshll.u32 %s554, 4
          %s559 = int_to_ptr.hbm [resolvable:$true] %s558
          %561 = dma.vmem_to_hbm [thread:$0]  %s557, 128, %s559, %s544
        $region40: #{tpu_custom_call.1} parent=27 // pred_fallthru
          _
      $region28: #{tpu_custom_call.1} parent=5 // pred_fallthru
        _
      %p562 = scmp.le.s32.totalorder 2, %s17
      // Predicated region
      $region41: #{tpu_custom_call.1} parent=5 // pred_check
        %p563 = pneg %p562
      $region42: #{tpu_custom_call.1} parent=5 // pred_check_branch
        %565 = sbr.rel (%p563) target = $region44
      $region43: #{tpu_custom_call.1} parent=5 // pred_region
        %s566 = ssub.s32 %s17, 2
        // Predicated region
        $region45: #{tpu_custom_call.1} parent=43 // pred_check
          %p567 = pneg %p98
        $region46: #{tpu_custom_call.1} parent=43 // pred_check_branch
          %569 = sbr.rel (%p567) target = $region48
        $region47: #{tpu_custom_call.1} parent=43 // pred_region
          %s570 = sand.u32 %s83, 1
          %s571 = scalar_lea.sflag [#allocation4], %s570
          %s572 = sand.u32 %s83, 1
          %s573 = smul.addr %s572, 8
          %s574 = scalar_lea.vmem [#allocation7], %s573
          %576 = dma.done %s571, 128
        $region48: #{tpu_custom_call.1} parent=43 // pred_fallthru
          _
      $region44: #{tpu_custom_call.1} parent=5 // pred_fallthru
        _
    $region6: #{tpu_custom_call.1} parent=1 // loop_footer
      %s21 = sadd.s32 1, %s17
    $region7: #{tpu_custom_call.1} parent=1 // loop_footer_branch
      %16 = sbr.rel target = $region3
    $region8: #{tpu_custom_call.1} parent=1 // loop_exit
      _
    %577 = vsyncpa [#allocation3], 1
    %s578 = scalar_lea.sflag [#allocation3], 1
    %579 = vsyncpa %s578, 1
    %580 = vsyncpa [#allocation6], 1
    %s581 = scalar_lea.sflag [#allocation6], 1
    %582 = vsyncpa %s581, 1
    %583 = vsyncpa [#allocation4], 1
    %s584 = scalar_lea.sflag [#allocation4], 1
    %585 = vsyncpa %s584, 1

</llo_original>
